<compile_context>
chip_gen: v5e
topology: v5e:2x2
jax: 0.10.0
libtpu: 0.0.40
codegen_flags: <defaults>
</compile_context>

<pallas_src>
import jax
import jax.numpy as jnp
from jax.experimental import pallas as pl
from jax.experimental.pallas import tpu as pltpu


def _round_up(x, m):
    return ((x + m - 1) // m) * m


def _transition_mlp_kernel(obs_ref, act_ref, w1o_ref, w1a_ref, b1_ref, w2_ref, b2_ref, o_ref):
    """Fused transition MLP: o = tanh(obs@W1_obs + act@W1_act + b1) @ W2 + b2."""
    h = jnp.dot(obs_ref[...], w1o_ref[...], preferred_element_type=jnp.float32)
    h = h + jnp.dot(act_ref[...], w1a_ref[...], preferred_element_type=jnp.float32)
    h = jnp.tanh(h + b1_ref[...])
    o = jnp.dot(h, w2_ref[...], preferred_element_type=jnp.float32) + b2_ref[...]
    o_ref[...] = o.astype(o_ref.dtype)


def make_params(obs_dim, act_dim, hidden, key):
    """Deterministic parameter init for the synthetic transition kernel (unpadded layout)."""
    k1, k2, k3, k4 = jax.random.split(key, 4)
    in_dim = obs_dim + act_dim
    w1 = jax.random.normal(k1, (in_dim, hidden), jnp.float32) / jnp.sqrt(in_dim)
    b1 = jax.random.normal(k2, (1, hidden), jnp.float32) * 0.01
    w2 = jax.random.normal(k3, (hidden, obs_dim), jnp.float32) / jnp.sqrt(hidden)
    b2 = jax.random.normal(k4, (1, obs_dim), jnp.float32) * 0.01
    return (w1, b1, w2, b2)


def prepare_params(params, obs_dim):
    """Split W1 into obs/act parts and zero-pad feature dims to lane-dense (x128) widths.

    Zero padding is semantically inert: padded hidden units are tanh(0)=0 and meet zero
    W2 rows; padded output columns get zero weight/bias and are sliced off in the wrapper.
    """
    w1, b1, w2, b2 = params
    in_dim, hidden = w1.shape
    act_dim = in_dim - obs_dim
    out_dim = w2.shape[1]
    hpad = _round_up(hidden, 128)
    opad = _round_up(out_dim, 128)

    w1_obs = jnp.zeros((obs_dim, hpad), w1.dtype).at[:, :hidden].set(w1[:obs_dim])
    w1_act = jnp.zeros((act_dim, hpad), w1.dtype).at[:, :hidden].set(w1[obs_dim:])
    b1p = jnp.zeros((1, hpad), b1.dtype).at[:, :hidden].set(b1)
    w2p = jnp.zeros((hpad, opad), w2.dtype).at[:hidden, :out_dim].set(w2)
    b2p = jnp.zeros((1, opad), b2.dtype).at[:, :out_dim].set(b2)
    return (w1_obs, w1_act, b1p, w2p, b2p)


def env_transition_forward(obs, action, prepared_params, out_dim, max_tile=1024):
    """EnvTransition.forward(obs, action) -> next_obs, via a batch-tiled Pallas kernel."""
    w1_obs, w1_act, b1, w2, b2 = prepared_params
    batch, obs_dim = obs.shape
    act_dim = action.shape[1]
    hpad = w1_obs.shape[1]
    opad = w2.shape[1]

    # Batch tile: 1024 rows when the batch is large (pipelined grid), otherwise one tile
    # rounded up to the sublane granularity. 1024-row f32 tiles keep the double-buffered
    # footprint ~1.3 MiB, safe for v7x's 64 MiB VMEM and v5e/v6e alike.
    if batch >= max_tile:
        tb = max_tile
    else:
        tb = _round_up(batch, 8)
    pbatch = _round_up(batch, tb)
    if pbatch != batch:
        obs = jnp.pad(obs, ((0, pbatch - batch), (0, 0)))
        action = jnp.pad(action, ((0, pbatch - batch), (0, 0)))

    grid = (pbatch // tb,)

    out = pl.pallas_call(
        _transition_mlp_kernel,
        out_shape=jax.ShapeDtypeStruct((pbatch, opad), obs.dtype),
        grid_spec=pltpu.PrefetchScalarGridSpec(
            num_scalar_prefetch=0,
            grid=grid,
            in_specs=[
                # Activations: tiled along batch.
                pl.BlockSpec((tb, obs_dim), lambda b: (b, 0)),
                pl.BlockSpec((tb, act_dim), lambda b: (b, 0)),
                # Weights / biases: constant block -> stay resident across grid steps.
                pl.BlockSpec((obs_dim, hpad), lambda b: (0, 0)),
                pl.BlockSpec((act_dim, hpad), lambda b: (0, 0)),
                pl.BlockSpec((1, hpad), lambda b: (0, 0)),
                pl.BlockSpec((hpad, opad), lambda b: (0, 0)),
                pl.BlockSpec((1, opad), lambda b: (0, 0)),
            ],
            out_specs=pl.BlockSpec((tb, opad), lambda b: (b, 0)),
        ),
        compiler_params=pltpu.CompilerParams(
            dimension_semantics=("parallel",),  # shard batch across TCs on v7x
        ),
    )(obs, action, w1_obs, w1_act, b1, w2, b2)

    return out[:batch, :out_dim]


if __name__ == "__main__":
    key = jax.random.PRNGKey(0)
    k_obs, k_act, k_par = jax.random.split(key, 3)

    batch, obs_dim, act_dim, hidden = 8, 16, 8, 32
    obs = jax.random.normal(k_obs, (batch, obs_dim), jnp.float32)
    action = jax.random.normal(k_act, (batch, act_dim), jnp.float32)

    params = make_params(obs_dim, act_dim, hidden, k_par)
    prepared = prepare_params(params, obs_dim)

    next_obs = env_transition_forward(obs, action, prepared, obs_dim)
    jax.block_until_ready(next_obs)

    # Pure-JAX reference of the same transition kernel (unpadded layout).
    w1, b1, w2, b2 = params
    x = jnp.concatenate([obs, action], axis=-1)
    ref = jnp.tanh(x @ w1 + b1) @ w2 + b2
    assert next_obs.shape == (batch, obs_dim)
    assert jnp.allclose(next_obs, ref, atol=1e-5, rtol=1e-5)

    print("KERNEL_OK")
</pallas_src>

<mosaic_0001>
module attributes {stable_mosaic.version = 11 : i64} {
  func.func @_transition_mlp_kernel(%arg0: i32, %arg1: memref<8x16xf32, #tpu.memory_space<vmem>>, %arg2: memref<8x8xf32, #tpu.memory_space<vmem>>, %arg3: memref<16x128xf32, #tpu.memory_space<vmem>>, %arg4: memref<8x128xf32, #tpu.memory_space<vmem>>, %arg5: memref<1x128xf32, #tpu.memory_space<vmem>>, %arg6: memref<128x128xf32, #tpu.memory_space<vmem>>, %arg7: memref<1x128xf32, #tpu.memory_space<vmem>>, %arg8: memref<8x128xf32, #tpu.memory_space<vmem>>) attributes {dimension_semantics = [#tpu.dimension_semantics<parallel>], iteration_bounds = array<i64: 1>, scalar_prefetch = 0 : i64, scratch_operands = 0 : i64, tpu.core_type = #tpu.core_type<tc>, window_params = [{transform_indices = @transform_0, window_bounds = array<i64: 8, 16>}, {transform_indices = @transform_1, window_bounds = array<i64: 8, 8>}, {pipeline_mode = #tpu.pipeline_mode<synchronous>, transform_indices = @transform_2, window_bounds = array<i64: 16, 128>}, {pipeline_mode = #tpu.pipeline_mode<synchronous>, transform_indices = @transform_3, window_bounds = array<i64: 8, 128>}, {pipeline_mode = #tpu.pipeline_mode<synchronous>, transform_indices = @transform_4, window_bounds = array<i64: 1, 128>}, {pipeline_mode = #tpu.pipeline_mode<synchronous>, transform_indices = @transform_5, window_bounds = array<i64: 128, 128>}, {pipeline_mode = #tpu.pipeline_mode<synchronous>, transform_indices = @transform_6, window_bounds = array<i64: 1, 128>}, {transform_indices = @transform_7, window_bounds = array<i64: 8, 128>}]} {
    %c0 = arith.constant 0 : index
    %c0_0 = arith.constant 0 : index
    %0 = vector.load %arg1[%c0, %c0_0] : memref<8x16xf32, #tpu.memory_space<vmem>>, vector<8x16xf32>
    %c0_1 = arith.constant 0 : index
    %c0_2 = arith.constant 0 : index
    %1 = vector.load %arg3[%c0_1, %c0_2] : memref<16x128xf32, #tpu.memory_space<vmem>>, vector<16x128xf32>
    %cst = arith.constant dense<0.000000e+00> : vector<8x128xf32>
    %2 = tpu.matmul %0, %1, %cst {dimension_numbers = #tpu.dot_dimension_numbers<[1], [0], [0], [1], [0, 0, 1, 1], [], []>} : vector<8x16xf32>, vector<16x128xf32>, vector<8x128xf32> -> vector<8x128xf32>
    %c0_3 = arith.constant 0 : index
    %c0_4 = arith.constant 0 : index
    %3 = vector.load %arg2[%c0_3, %c0_4] : memref<8x8xf32, #tpu.memory_space<vmem>>, vector<8x8xf32>
    %c0_5 = arith.constant 0 : index
    %c0_6 = arith.constant 0 : index
    %4 = vector.load %arg4[%c0_5, %c0_6] : memref<8x128xf32, #tpu.memory_space<vmem>>, vector<8x128xf32>
    %cst_7 = arith.constant dense<0.000000e+00> : vector<8x128xf32>
    %5 = tpu.matmul %3, %4, %cst_7 {dimension_numbers = #tpu.dot_dimension_numbers<[1], [0], [0], [1], [0, 0, 1, 1], [], []>} : vector<8x8xf32>, vector<8x128xf32>, vector<8x128xf32> -> vector<8x128xf32>
    %6 = arith.addf %2, %5 : vector<8x128xf32>
    %c0_8 = arith.constant 0 : index
    %c0_9 = arith.constant 0 : index
    %7 = vector.load %arg5[%c0_8, %c0_9] : memref<1x128xf32, #tpu.memory_space<vmem>>, vector<1x128xf32>
    %8 = vector.broadcast %7 : vector<1x128xf32> to vector<8x128xf32>
    %9 = arith.addf %6, %8 : vector<8x128xf32>
    %10 = math.tanh %9 : vector<8x128xf32>
    %c0_10 = arith.constant 0 : index
    %c0_11 = arith.constant 0 : index
    %11 = vector.load %arg6[%c0_10, %c0_11] : memref<128x128xf32, #tpu.memory_space<vmem>>, vector<128x128xf32>
    %cst_12 = arith.constant dense<0.000000e+00> : vector<8x128xf32>
    %12 = tpu.matmul %10, %11, %cst_12 {dimension_numbers = #tpu.dot_dimension_numbers<[1], [0], [0], [1], [0, 0, 1, 1], [], []>} : vector<8x128xf32>, vector<128x128xf32>, vector<8x128xf32> -> vector<8x128xf32>
    %c0_13 = arith.constant 0 : index
    %c0_14 = arith.constant 0 : index
    %13 = vector.load %arg7[%c0_13, %c0_14] : memref<1x128xf32, #tpu.memory_space<vmem>>, vector<1x128xf32>
    %14 = vector.broadcast %13 : vector<1x128xf32> to vector<8x128xf32>
    %15 = arith.addf %12, %14 : vector<8x128xf32>
    %c0_15 = arith.constant 0 : index
    %c0_16 = arith.constant 0 : index
    %16 = vector.load %arg8[%c0_15, %c0_16] : memref<8x128xf32, #tpu.memory_space<vmem>>, vector<8x128xf32>
    tpu.vector_store %arg8[%c0_15, %c0_16], %15 {strides = array<i32>} : memref<8x128xf32, #tpu.memory_space<vmem>>, vector<8x128xf32>,
    return
  }
  func.func @transform_0(%arg0: i32) -> (i32, i32) {
    %c0_i32 = arith.constant 0 : i32
    %c0_i32_0 = arith.constant 0 : i32
    return %arg0, %c0_i32 : i32, i32
  }
  func.func @transform_1(%arg0: i32) -> (i32, i32) {
    %c0_i32 = arith.constant 0 : i32
    %c0_i32_0 = arith.constant 0 : i32
    return %arg0, %c0_i32 : i32, i32
  }
  func.func @transform_2(%arg0: i32) -> (i32, i32) {
    %c0_i32 = arith.constant 0 : i32
    %c0_i32_0 = arith.constant 0 : i32
    %c0_i32_1 = arith.constant 0 : i32
    return %c0_i32, %c0_i32_0 : i32, i32
  }
  func.func @transform_3(%arg0: i32) -> (i32, i32) {
    %c0_i32 = arith.constant 0 : i32
    %c0_i32_0 = arith.constant 0 : i32
    %c0_i32_1 = arith.constant 0 : i32
    return %c0_i32, %c0_i32_0 : i32, i32
  }
  func.func @transform_4(%arg0: i32) -> (i32, i32) {
    %c0_i32 = arith.constant 0 : i32
    %c0_i32_0 = arith.constant 0 : i32
    %c0_i32_1 = arith.constant 0 : i32
    return %c0_i32, %c0_i32_0 : i32, i32
  }
  func.func @transform_5(%arg0: i32) -> (i32, i32) {
    %c0_i32 = arith.constant 0 : i32
    %c0_i32_0 = arith.constant 0 : i32
    %c0_i32_1 = arith.constant 0 : i32
    return %c0_i32, %c0_i32_0 : i32, i32
  }
  func.func @transform_6(%arg0: i32) -> (i32, i32) {
    %c0_i32 = arith.constant 0 : i32
    %c0_i32_0 = arith.constant 0 : i32
    %c0_i32_1 = arith.constant 0 : i32
    return %c0_i32, %c0_i32_0 : i32, i32
  }
  func.func @transform_7(%arg0: i32) -> (i32, i32) {
    %c0_i32 = arith.constant 0 : i32
    %c0_i32_0 = arith.constant 0 : i32
    return %arg0, %c0_i32 : i32, i32
  }
}

</mosaic_0001>

<llo_original>
// kernel: tpu_custom_call.1
$region0: #{tpu_custom_call.1}
  #allocation0 [shape = 'u32[]', space=smem, size = 0x4, offset = 0x4, fixed_abs, tag = 'smem constant byte address 0x4 - core index']
  #allocation1 [shape = 'u32[72,128]{1,0:T(1,128)}', space=vmem, size = 0x9000, scoped, tag = 'internal scratch']
  %s0 = inlined_call_operand.hbm [shape: f32[8,16], index: 0, kind: input, shape index: {}]
  %s1 = inlined_call_operand.hbm [shape: f32[8,8], index: 1, kind: input, shape index: {}]
  %s2 = inlined_call_operand.hbm [shape: f32[16,128], index: 2, kind: input, shape index: {}]
  %s3 = inlined_call_operand.hbm [shape: f32[8,128], index: 3, kind: input, shape index: {}]
  %s4 = inlined_call_operand.vmem [shape: f32[1,128], index: 4, kind: input, shape index: {}]
  %s5 = inlined_call_operand.hbm [shape: f32[128,128], index: 5, kind: input, shape index: {}]
  %s6 = inlined_call_operand.vmem [shape: f32[1,128], index: 6, kind: input, shape index: {}]
  %s7 = inlined_call_operand.hbm [shape: f32[8,128], index: 7, kind: output, shape index: {}]
  %s8 = sld [smem:[#allocation0]]
  $region58: #{tpu_custom_call.1} parent=0
    _
  %s10 = ssub.s32 1, %s8
  %s11 = scalar_select 0, %s10, %s8
  $region1: #{tpu_custom_call.1} parent=0
    #allocation2 [shape = 'u8[4096]{0}', space=vmem, size = 0x1000, scoped, tag = 'input window, operand 0, single buffered']
    #allocation3 [shape = 's32[1]{0}', space=sflag, size = 0x4, scoped, tag = 'scoped memory for tpu_custom_call.1']
    #allocation4 [shape = 's32[1]{0}', space=sflag, size = 0x4, scoped, tag = 'scoped memory for tpu_custom_call.1']
    #allocation5 [shape = 'u8[4096]{0}', space=vmem, size = 0x1000, scoped, tag = 'input window, operand 1, single buffered']
    #allocation6 [shape = 's32[1]{0}', space=sflag, size = 0x4, scoped, tag = 'scoped memory for tpu_custom_call.1']
    #allocation7 [shape = 'u8[8192]{0}', space=vmem, size = 0x2000, scoped, tag = 'input window, operand 2, single buffered']
    #allocation8 [shape = 'u8[4096]{0}', space=vmem, size = 0x1000, scoped, tag = 'input window, operand 3, single buffered']
    #allocation9 [shape = 's32[1]{0}', space=sflag, size = 0x4, scoped, tag = 'scoped memory for tpu_custom_call.1']
    #allocation10 [shape = 'u8[65536]{0}', space=vmem, size = 0x10000, scoped, tag = 'input window, operand 5, single buffered']
    #allocation11 [shape = 'u8[4096]{0}', space=vmem, size = 0x1000, scoped, tag = 'output window, operand 0, single buffered']
    %12 = vsyncpa [#allocation3], 0
    %13 = vsyncpa [#allocation6], 0
    %14 = vsyncpa [#allocation9], 0
    %15 = vsyncpa [#allocation4], 0
    // Predicated region
    $region2: #{tpu_custom_call.1} parent=1 // pred_check
      _
    $region3: #{tpu_custom_call.1} parent=1 // pred_check_branch
      %17 = sbr.rel (0) target = $region5
    $region4: #{tpu_custom_call.1} parent=1 // pred_region
      %19 = vsyncadd [#allocation3], 0
      %s21 = sshll.u32 %s0, 4
      %s22 = int_to_ptr.hbm [resolvable:$true] %s21
      %s23 = sshll.u32 [#allocation2], 4
      %s24 = int_to_ptr.vmem [resolvable:$true] %s23
      %26 = dma.hbm_to_vmem [thread:$0]  %s22, 128, %s24, [#allocation3]
    $region5: #{tpu_custom_call.1} parent=1 // pred_fallthru
      _
    // Predicated region
    $region6: #{tpu_custom_call.1} parent=1 // pred_check
      _
    $region7: #{tpu_custom_call.1} parent=1 // pred_check_branch
      %28 = sbr.rel (0) target = $region9
    $region8: #{tpu_custom_call.1} parent=1 // pred_region
      %30 = vsyncadd [#allocation6], 0
      %s32 = sshll.u32 %s1, 4
      %s33 = int_to_ptr.hbm [resolvable:$true] %s32
      %s34 = sshll.u32 [#allocation5], 4
      %s35 = int_to_ptr.vmem [resolvable:$true] %s34
      %37 = dma.hbm_to_vmem [thread:$0]  %s33, 128, %s35, [#allocation6]
    $region9: #{tpu_custom_call.1} parent=1 // pred_fallthru
      _
    // Predicated region
    $region10: #{tpu_custom_call.1} parent=1 // pred_check
      _
    $region11: #{tpu_custom_call.1} parent=1 // pred_check_branch
      %39 = sbr.rel (0) target = $region13
    $region12: #{tpu_custom_call.1} parent=1 // pred_region
      %41 = vsyncadd [#allocation6], 0
      %s42 = sshll.u32 %s2, 4
      %s43 = int_to_ptr.hbm [resolvable:$true] %s42
      %s44 = sshll.u32 [#allocation7], 4
      %s45 = int_to_ptr.vmem [resolvable:$true] %s44
      %50 = dma.hbm_to_vmem [thread:$0]  %s43, 256, %s45, [#allocation6], 128, 128, 8
    $region13: #{tpu_custom_call.1} parent=1 // pred_fallthru
      _
    // Predicated region
    $region14: #{tpu_custom_call.1} parent=1 // pred_check
      _
    $region15: #{tpu_custom_call.1} parent=1 // pred_check_branch
      %52 = sbr.rel (0) target = $region17
    $region16: #{tpu_custom_call.1} parent=1 // pred_region
      %54 = vsyncadd [#allocation9], 0
      %s56 = sshll.u32 %s3, 4
      %s57 = int_to_ptr.hbm [resolvable:$true] %s56
      %s58 = sshll.u32 [#allocation8], 4
      %s59 = int_to_ptr.vmem [resolvable:$true] %s58
      %61 = dma.hbm_to_vmem [thread:$0]  %s57, 128, %s59, [#allocation9]
    $region17: #{tpu_custom_call.1} parent=1 // pred_fallthru
      _
    // Predicated region
    $region18: #{tpu_custom_call.1} parent=1 // pred_check
      _
    $region19: #{tpu_custom_call.1} parent=1 // pred_check_branch
      %63 = sbr.rel (0) target = $region21
    $region20: #{tpu_custom_call.1} parent=1 // pred_region
      _
    $region21: #{tpu_custom_call.1} parent=1 // pred_fallthru
      _
    // Predicated region
    $region22: #{tpu_custom_call.1} parent=1 // pred_check
      _
    $region23: #{tpu_custom_call.1} parent=1 // pred_check_branch
      %65 = sbr.rel (0) target = $region25
    $region24: #{tpu_custom_call.1} parent=1 // pred_region
      %67 = vsyncadd [#allocation9], 0
      %s68 = sshll.u32 %s5, 4
      %s69 = int_to_ptr.hbm [resolvable:$true] %s68
      %s70 = sshll.u32 [#allocation10], 4
      %s71 = int_to_ptr.vmem [resolvable:$true] %s70
      %76 = dma.hbm_to_vmem [thread:$0]  %s69, 2048, %s71, [#allocation9], 128, 128, 8
    $region25: #{tpu_custom_call.1} parent=1 // pred_fallthru
      _
    // Predicated region
    $region26: #{tpu_custom_call.1} parent=1 // pred_check
      _
    $region27: #{tpu_custom_call.1} parent=1 // pred_check_branch
      %78 = sbr.rel (0) target = $region29
    $region28: #{tpu_custom_call.1} parent=1 // pred_region
      _
    $region29: #{tpu_custom_call.1} parent=1 // pred_fallthru
      _
    // Predicated region
    $region30: #{tpu_custom_call.1} parent=1 // pred_check
      _
    $region31: #{tpu_custom_call.1} parent=1 // pred_check_branch
      %80 = sbr.rel (0) target = $region33
    $region32: #{tpu_custom_call.1} parent=1 // pred_region
      %82 = dma.done [#allocation3], 128
    $region33: #{tpu_custom_call.1} parent=1 // pred_fallthru
      _
    // Predicated region
    $region34: #{tpu_custom_call.1} parent=1 // pred_check
      _
    $region35: #{tpu_custom_call.1} parent=1 // pred_check_branch
      %84 = sbr.rel (0) target = $region37
    $region36: #{tpu_custom_call.1} parent=1 // pred_region
      %86 = dma.done [#allocation6], 128
    $region37: #{tpu_custom_call.1} parent=1 // pred_fallthru
      _
    // Predicated region
    $region38: #{tpu_custom_call.1} parent=1 // pred_check
      _
    $region39: #{tpu_custom_call.1} parent=1 // pred_check_branch
      %88 = sbr.rel (0) target = $region41
    $region40: #{tpu_custom_call.1} parent=1 // pred_region
      %90 = dma.done [#allocation6], 256
    $region41: #{tpu_custom_call.1} parent=1 // pred_fallthru
      _
    // Predicated region
    $region42: #{tpu_custom_call.1} parent=1 // pred_check
      _
    $region43: #{tpu_custom_call.1} parent=1 // pred_check_branch
      %92 = sbr.rel (0) target = $region45
    $region44: #{tpu_custom_call.1} parent=1 // pred_region
      %94 = dma.done [#allocation9], 128
    $region45: #{tpu_custom_call.1} parent=1 // pred_fallthru
      _
    // Predicated region
    $region46: #{tpu_custom_call.1} parent=1 // pred_check
      _
    $region47: #{tpu_custom_call.1} parent=1 // pred_check_branch
      %96 = sbr.rel (0) target = $region49
    $region48: #{tpu_custom_call.1} parent=1 // pred_region
      %98 = dma.done [#allocation9], 2048
    $region49: #{tpu_custom_call.1} parent=1 // pred_fallthru
      _
    %v99 = vld [vmem:[#allocation2] sm:$0xff]
    %v100 = vld [vmem:[#allocation7] sm:$0xff]
    %v101 = vld [vmem:[#allocation7 + $0x8] sm:$0xff]
    %v102 = vld [vmem:[#allocation5] sm:$0xff]
    %v103 = vld [vmem:[#allocation8] sm:$0xff]
    %vm104 = vcmask 64512
    %v106 = vsel %vm104, %v102, 0
    %108 = vmatpush.msra.mxu0 0.0
    %109 = vmatpush.msra.mxu0 0.0
    %110 = vmatpush.msra.mxu0 0.0
    %111 = vmatpush.msra.mxu0 0.0
    %112 = vmatpush.msra.mxu0 0.0
    %113 = vmatpush.msra.mxu0 0.0
    %114 = vmatpush.msra.mxu0 0.0
    %115 = vmatpush.msra.mxu0 0.0
    %116 = vmatpush.msra.mxu0 0.0
    %117 = vmatpush.msra.mxu0 0.0
    %118 = vmatpush.msra.mxu0 0.0
    %119 = vmatpush.msra.mxu0 0.0
    %120 = vmatpush.msra.mxu0 0.0
    %121 = vmatpush.msra.mxu0 0.0
    %122 = vmatpush.msra.mxu0 0.0
    %123 = vmatpush.msra.mxu0 %v103
    %124 = vmatmul.f32.gmra.mxu0 %v106
    %v125 = vpop.f32.mrf.mxu0
    %v126 = vadd.f32 0.0, %v125
    %127 = vdwg.mxu0
    %vm128 = vcmask 130048
    %v130 = vsel %vm128, %v99, 0
    %132 = vmatpush.msra.mxu0 0.0
    %133 = vmatpush.msra.mxu0 0.0
    %134 = vmatpush.msra.mxu0 0.0
    %135 = vmatpush.msra.mxu0 0.0
    %136 = vmatpush.msra.mxu0 0.0
    %137 = vmatpush.msra.mxu0 0.0
    %138 = vmatpush.msra.mxu0 0.0
    %139 = vmatpush.msra.mxu0 0.0
    %140 = vmatpush.msra.mxu0 0.0
    %141 = vmatpush.msra.mxu0 0.0
    %142 = vmatpush.msra.mxu0 0.0
    %143 = vmatpush.msra.mxu0 0.0
    %144 = vmatpush.msra.mxu0 0.0
    %145 = vmatpush.msra.mxu0 0.0
    %146 = vmatpush.msra.mxu0 %v101
    %147 = vmatpush.msra.mxu0 %v100
    %148 = vmatmul.f32.gmra.mxu0 %v130
    %v149 = vpop.f32.mrf.mxu0
    %v150 = vadd.f32 %v126, %v149
    %151 = vdwg.mxu0
    %v152 = vld [vmem:[%s4] sm:$0x1]
    %v154 = vperm.slane %v152, 0
    %v156 = vadd.f32 %v150, %v154
    %v157 = vtanh.pop %v156
    %v158 = vld [vmem:[#allocation10] sm:$0xff]
    %v159 = vld [vmem:[#allocation10 + $0x8] sm:$0xff]
    %v160 = vld [vmem:[#allocation10 + $0x10] sm:$0xff]
    %v161 = vld [vmem:[#allocation10 + $0x18] sm:$0xff]
    %v162 = vld [vmem:[#allocation10 + $0x20] sm:$0xff]
    %v163 = vld [vmem:[#allocation10 + $0x28] sm:$0xff]
    %v164 = vld [vmem:[#allocation10 + $0x30] sm:$0xff]
    %v165 = vld [vmem:[#allocation10 + $0x38] sm:$0xff]
    %v166 = vld [vmem:[#allocation10 + $0x40] sm:$0xff]
    %v167 = vld [vmem:[#allocation10 + $0x48] sm:$0xff]
    %v168 = vld [vmem:[#allocation10 + $0x50] sm:$0xff]
    %v169 = vld [vmem:[#allocation10 + $0x58] sm:$0xff]
    %v170 = vld [vmem:[#allocation10 + $0x60] sm:$0xff]
    %v171 = vld [vmem:[#allocation10 + $0x68] sm:$0xff]
    %v172 = vld [vmem:[#allocation10 + $0x70] sm:$0xff]
    %v173 = vld [vmem:[#allocation10 + $0x78] sm:$0xff]
    %v174 = vld [vmem:[%s6] sm:$0x1]
    %v176 = vperm.slane %v174, 0
    %178 = vmatpush.msra.mxu0 %v173
    %179 = vmatpush.msra.mxu0 %v172
    %180 = vmatpush.msra.mxu0 %v171
    %181 = vmatpush.msra.mxu0 %v170
    %182 = vmatpush.msra.mxu0 %v169
    %183 = vmatpush.msra.mxu0 %v168
    %184 = vmatpush.msra.mxu0 %v167
    %185 = vmatpush.msra.mxu0 %v166
    %186 = vmatpush.msra.mxu0 %v165
    %187 = vmatpush.msra.mxu0 %v164
    %188 = vmatpush.msra.mxu0 %v163
    %189 = vmatpush.msra.mxu0 %v162
    %190 = vmatpush.msra.mxu0 %v161
    %191 = vmatpush.msra.mxu0 %v160
    %192 = vmatpush.msra.mxu0 %v159
    %193 = vmatpush.msra.mxu0 %v158
    %194 = vmatmul.f32.gmra.mxu0 %v157
    %v195 = vpop.f32.mrf.mxu0
    %v196 = vadd.f32 %v176, %v195
    %197 = vdwg.mxu0
    %198 = vst [vmem:[#allocation11] sm:$0xff] %v196
    // Predicated region
    $region50: #{tpu_custom_call.1} parent=1 // pred_check
      _
    $region51: #{tpu_custom_call.1} parent=1 // pred_check_branch
      %200 = sbr.rel (0) target = $region53
    $region52: #{tpu_custom_call.1} parent=1 // pred_region
      %202 = vsyncadd [#allocation4], 0
      %s204 = sshll.u32 [#allocation11], 4
      %s205 = int_to_ptr.vmem [resolvable:$true] %s204
      %s206 = sshll.u32 %s7, 4
      %s207 = int_to_ptr.hbm [resolvable:$true] %s206
      %209 = dma.vmem_to_hbm [thread:$0]  %s205, 128, %s207, [#allocation4]
    $region53: #{tpu_custom_call.1} parent=1 // pred_fallthru
      _
    // Predicated region
    $region54: #{tpu_custom_call.1} parent=1 // pred_check
      _
    $region55: #{tpu_custom_call.1} parent=1 // pred_check_branch
      %211 = sbr.rel (0) target = $region57
    $region56: #{tpu_custom_call.1} parent=1 // pred_region
      %213 = dma.done [#allocation4], 128
    $region57: #{tpu_custom_call.1} parent=1 // pred_fallthru
      _
    %214 = vsyncpa [#allocation3], 1
    %215 = vsyncpa [#allocation6], 1
    %216 = vsyncpa [#allocation9], 1
    %217 = vsyncpa [#allocation4], 1

</llo_original>
